<compile_context>
chip_gen: v5e
topology: v5e:2x2
jax: 0.10.0
libtpu: 0.0.40
codegen_flags: <defaults>
</compile_context>

<pallas_src>
import jax
import jax.numpy as jnp
from jax.experimental import pallas as pl
from jax.experimental.pallas import tpu as pltpu


def _trailing_padding_kernel(x_ref, o_ref):
    # Main path: input and output blocks have identical shapes, so the slice
    # is a full view (zero cost) and this is a straight VMEM copy.
    # Tiny-shape (forced-Pallas) fallback: the input block carries the whole
    # length axis and the slice drops the trailing padding in VMEM.
    o_ref[...] = x_ref[:, : o_ref.shape[-1]]


def trailing_padding(x: jax.Array, padding: int, *,
                     row_tile_max: int = 512,
                     l_tile_max: int = 2048,
                     tile_bytes_cap: int = 8 * 1024 * 1024,
                     min_pallas_out_bytes: int = 256 * 1024,
                     force_pallas: bool = False) -> jax.Array:
    """Equivalent of TrailingPadding(padding)(x) for x of shape (N, C, L)."""
    # Intentionally diverges from PyTorch's degenerate padding=0 case
    # (which would return an empty tensor).
    assert padding > 0, "padding must be positive (matches x[:, :, :-padding])"
    n, c, l = x.shape
    l_out = l - padding
    assert l_out > 0, "padding must be smaller than the length axis"

    itemsize = jnp.dtype(x.dtype).itemsize
    out_bytes = n * c * l_out * itemsize

    # Tiny / narrow shapes: XLA's native slice is already at HBM roofline and
    # avoids custom-call + pipeline startup cost and sub-128 masked stores.
    # Shapes are static, so this is a trace-time branch.
    if not force_pallas and (l_out < 128 or out_bytes < min_pallas_out_bytes):
        return x[:, :, :l_out]

    # ---- flatten (N, C) into one row axis (free, contiguous) ---------------
    rows = n * c
    x2 = x.reshape(rows, l)

    # ---- row (sublane) tiling: aligned to the dtype pack factor ------------
    # 8 rows/f32, 16 rows/bf16, 32 rows/int8-fp8 keep vregs fully packed and
    # every vst unmasked along the row axis.
    sub = 8 * max(1, 4 // itemsize)
    if rows >= sub:
        tr = min(row_tile_max, (rows // sub) * sub)
    else:
        tr = rows

    # ---- length tiling over the OUTPUT length -------------------------------
    # tl is a multiple of 128 (lane-dense, unmasked vst) whenever possible and
    # the input block uses the *same* window as the output block.  For tiny
    # l_out (< 128, only reachable with force_pallas) fall back to full-axis
    # blocks (legal per the (8,128) rule) and slice off the tail in VMEM.
    if l_out >= 128:
        tl = min(l_tile_max, (l_out // 128) * 128)
        in_tl = tl
    else:
        tl = l_out
        in_tl = l

    # Safety cap: keep each tile <= tile_bytes_cap so 2 buffers x (in + out)
    # stay well inside the VMEM budget on every generation (incl. v7x 64 MiB).
    while tr > sub and tr * max(tl, in_tl) * itemsize > tile_bytes_cap:
        tr = max(sub, tr - sub)

    grid = (pl.cdiv(rows, tr), pl.cdiv(l_out, tl))

    out2 = pl.pallas_call(
        _trailing_padding_kernel,
        out_shape=jax.ShapeDtypeStruct((rows, l_out), x.dtype),
        grid=grid,
        in_specs=[pl.BlockSpec((tr, in_tl), lambda i, j: (i, j))],
        out_specs=pl.BlockSpec((tr, tl), lambda i, j: (i, j)),
        compiler_params=pltpu.CompilerParams(
            # Pure copy: every grid axis is independent.  Leading axis is the
            # large, balanced row-tile axis -> even 2-TC split on v7x
            # (harmless on single-TC v5e/v6e).
            dimension_semantics=("parallel", "parallel"),
            # Portable budget: <= v7x's 64 MiB physical, lifts v5e/v6e past
            # their scoped defaults; tiles above use at most ~16 MiB total.
            vmem_limit_bytes=48 * 1024 * 1024,
        ),
        # Zero-FLOP copy: read + write l_out elements per row; lets XLA's
        # scheduler overlap this custom call with neighboring ops.
        cost_estimate=pl.CostEstimate(
            flops=0,
            transcendentals=0,
            bytes_accessed=2 * rows * l_out * itemsize,
        ),
    )(x2)

    return out2.reshape(n, c, l_out)


if __name__ == "__main__":
    key = jax.random.PRNGKey(0)
    k1, k2, k3, k4 = jax.random.split(key, 4)

    # 1) Small shape consistent with a 1D-conv activation (batch, channels,
    #    length), forced through the Pallas path to validate the tiny/full-
    #    block configuration on-device.
    N, C, L, pad = 2, 4, 16, 2
    x = jax.random.normal(k1, (N, C, L), dtype=jnp.float32)
    y = jax.block_until_ready(trailing_padding(x, pad, force_pallas=True))
    assert y.shape == (N, C, L - pad), y.shape
    assert jnp.array_equal(y, x[:, :, :-pad]), "mismatch (small, forced Pallas)"

    # 1b) Default dispatch for the same tiny shape (XLA slice path).
    y0 = jax.block_until_ready(trailing_padding(x, pad))
    assert jnp.array_equal(y0, x[:, :, :-pad]), "mismatch (tiny XLA-slice path)"

    # 2) f32 tiled path: flattened rows, lane-dense 128-multiple length tiles,
    #    ragged tail block along L.
    x2 = jax.random.normal(k2, (2, 256, 700), dtype=jnp.float32)
    y2 = jax.block_until_ready(trailing_padding(x2, 3))
    assert y2.shape == (2, 256, 697), y2.shape
    assert jnp.array_equal(y2, x2[:, :, :-3]), "mismatch (f32 tiled path)"

    # 3) bf16: pack-aligned sublane tiling (16-row quantum), ragged L tail.
    x3 = jax.random.normal(k3, (2, 128, 640)).astype(jnp.bfloat16)
    y3 = jax.block_until_ready(trailing_padding(x3, 4))
    assert y3.shape == (2, 128, 636), y3.shape
    assert jnp.array_equal(y3, x3[:, :, :-4]), "mismatch (bf16 pack-aligned path)"

    # 4) Ragged row-tile AND ragged length-tile together (odd N*C, odd L).
    x4 = jax.random.normal(k4, (3, 150, 200), dtype=jnp.float32)
    y4 = jax.block_until_ready(trailing_padding(x4, 8))
    assert y4.shape == (3, 150, 192), y4.shape
    assert jnp.array_equal(y4, x4[:, :, :-8]), "mismatch (ragged rows + ragged L)"

    print("KERNEL_OK")
</pallas_src>

<mosaic_0001>
module attributes {stable_mosaic.version = 11 : i64} {
  func.func @_trailing_padding_kernel(%arg0: i32, %arg1: i32, %arg2: memref<8x16xf32, #tpu.memory_space<vmem>>, %arg3: memref<8x14xf32, #tpu.memory_space<vmem>>) attributes {dimension_semantics = [#tpu.dimension_semantics<parallel>, #tpu.dimension_semantics<parallel>], iteration_bounds = array<i64: 1, 1>, scalar_prefetch = 0 : i64, scratch_operands = 0 : i64, tpu.core_type = #tpu.core_type<tc>, window_params = [{transform_indices = @transform_0, window_bounds = array<i64: 8, 16>}, {transform_indices = @transform_1, window_bounds = array<i64: 8, 14>}]} {
    %c0 = arith.constant 0 : index
    %c0_0 = arith.constant 0 : index
    %0 = vector.load %arg2[%c0, %c0_0] : memref<8x16xf32, #tpu.memory_space<vmem>>, vector<8x14xf32>
    %c0_1 = arith.constant 0 : index
    %c0_2 = arith.constant 0 : index
    %1 = vector.load %arg3[%c0_1, %c0_2] : memref<8x14xf32, #tpu.memory_space<vmem>>, vector<8x14xf32>
    tpu.vector_store %arg3[%c0_1, %c0_2], %0 {strides = array<i32>} : memref<8x14xf32, #tpu.memory_space<vmem>>, vector<8x14xf32>,
    return
  }
  func.func @transform_0(%arg0: i32, %arg1: i32) -> (i32, i32) {
    %c0_i32 = arith.constant 0 : i32
    return %arg0, %arg1 : i32, i32
  }
  func.func @transform_1(%arg0: i32, %arg1: i32) -> (i32, i32) {
    %c0_i32 = arith.constant 0 : i32
    return %arg0, %arg1 : i32, i32
  }
}

</mosaic_0001>

<llo_original>
// kernel: tpu_custom_call.1
$region0: #{tpu_custom_call.1}
  #allocation0 [shape = 'u32[]', space=smem, size = 0x4, offset = 0x4, fixed_abs, tag = 'smem constant byte address 0x4 - core index']
  #allocation1 [shape = 'u32[72,128]{1,0:T(1,128)}', space=vmem, size = 0x9000, scoped, tag = 'internal scratch']
  %s0 = inlined_call_operand.hbm [shape: f32[8,16], index: 0, kind: input, shape index: {}]
  %s1 = inlined_call_operand.hbm [shape: f32[8,14], index: 1, kind: output, shape index: {}]
  %s2 = sld [smem:[#allocation0]]
  $region18: #{tpu_custom_call.1} parent=0
    _
  %s4 = ssub.s32 1, %s2
  %s5 = scalar_select 0, %s4, %s2
  $region1: #{tpu_custom_call.1} parent=0
    #allocation2 [shape = 'u8[4096]{0}', space=vmem, size = 0x1000, scoped, tag = 'input window, operand 0, single buffered']
    #allocation3 [shape = 's32[1]{0}', space=sflag, size = 0x4, scoped, tag = 'scoped memory for tpu_custom_call.1']
    #allocation4 [shape = 's32[1]{0}', space=sflag, size = 0x4, scoped, tag = 'scoped memory for tpu_custom_call.1']
    #allocation5 [shape = 'u8[4096]{0}', space=vmem, size = 0x1000, scoped, tag = 'output window, operand 0, single buffered']
    %6 = vsyncpa [#allocation3], 0
    %7 = vsyncpa [#allocation4], 0
    // Predicated region
    $region2: #{tpu_custom_call.1} parent=1 // pred_check
      _
    $region3: #{tpu_custom_call.1} parent=1 // pred_check_branch
      %9 = sbr.rel (0) target = $region5
    $region4: #{tpu_custom_call.1} parent=1 // pred_region
      %11 = vsyncadd [#allocation3], 0
      %s13 = sshll.u32 %s0, 4
      %s14 = int_to_ptr.hbm [resolvable:$true] %s13
      %s15 = sshll.u32 [#allocation2], 4
      %s16 = int_to_ptr.vmem [resolvable:$true] %s15
      %18 = dma.hbm_to_vmem [thread:$0]  %s14, 128, %s16, [#allocation3]
    $region5: #{tpu_custom_call.1} parent=1 // pred_fallthru
      _
    // Predicated region
    $region6: #{tpu_custom_call.1} parent=1 // pred_check
      _
    $region7: #{tpu_custom_call.1} parent=1 // pred_check_branch
      %20 = sbr.rel (0) target = $region9
    $region8: #{tpu_custom_call.1} parent=1 // pred_region
      %22 = dma.done [#allocation3], 128
    $region9: #{tpu_custom_call.1} parent=1 // pred_fallthru
      _
    %v23 = vld [vmem:[#allocation2] sm:$0xff]
    %vm24 = vcmask 113664
    %25 = vst.msk [vmem:[#allocation5] sm:$0xff] %vm24, %v23
    // Predicated region
    $region10: #{tpu_custom_call.1} parent=1 // pred_check
      _
    $region11: #{tpu_custom_call.1} parent=1 // pred_check_branch
      %27 = sbr.rel (0) target = $region13
    $region12: #{tpu_custom_call.1} parent=1 // pred_region
      %29 = vsyncadd [#allocation4], 0
      %s31 = sshll.u32 [#allocation5], 4
      %s32 = int_to_ptr.vmem [resolvable:$true] %s31
      %s33 = sshll.u32 %s1, 4
      %s34 = int_to_ptr.hbm [resolvable:$true] %s33
      %36 = dma.vmem_to_hbm [thread:$0]  %s32, 128, %s34, [#allocation4]
    $region13: #{tpu_custom_call.1} parent=1 // pred_fallthru
      _
    // Predicated region
    $region14: #{tpu_custom_call.1} parent=1 // pred_check
      _
    $region15: #{tpu_custom_call.1} parent=1 // pred_check_branch
      %38 = sbr.rel (0) target = $region17
    $region16: #{tpu_custom_call.1} parent=1 // pred_region
      %40 = dma.done [#allocation4], 128
    $region17: #{tpu_custom_call.1} parent=1 // pred_fallthru
      _
    %41 = vsyncpa [#allocation3], 1
    %42 = vsyncpa [#allocation4], 1

</llo_original>
